<compile_context>
chip_gen: v5e
topology: v5e:2x2
jax: 0.10.0
libtpu: 0.0.40
codegen_flags: <defaults>
</compile_context>

<pallas_src>
import jax
import jax.numpy as jnp
from jax.experimental import pallas as pl
from jax.experimental.pallas import tpu as pltpu


def _build_kernel(n_valid_rows, bt, ragged):
    """Kernel over one batch tile of the flattened input."""

    def kernel(c_ref, x_ref, w_ref, out_ref):
        # c_ref:   (1, 1)      SMEM scalar: b1 * sum(w2) + b2
        # x_ref:   (bt, T*D)   VMEM batch tile (flattened features, contiguous)
        # w_ref:   (1, T*D)    fused weight row  (w2^T * w1 flattened)
        # out_ref: (1, bt)     lane-dense per-tile output row
        x = x_ref[...]
        w = w_ref[...]
        # Fused multiply + per-row reduction. Mosaic lowers the lane-axis sum
        # as VPU adds across vregs plus a single cross-lane reduce per row
        # group, so the kernel stays HBM-bandwidth-bound on v5e/v6e/v7x.
        z = jnp.sum(x * w, axis=-1) + c_ref[0, 0]          # (bt,)
        if ragged:
            # Last grid step may run past the true batch: the excess rows of
            # the x block hold unspecified data, so zero their output slots
            # (they are sliced off in the wrapper anyway).
            g = pl.program_id(0)
            lane = jax.lax.broadcasted_iota(jnp.int32, (1, bt), 1)
            valid = lane < (n_valid_rows - g * bt)
            out_ref[...] = jnp.where(valid, z[None, :], 0.0)
        else:
            out_ref[0, :] = z

    return kernel


def _choose_batch_tile(B, row_bytes,
                       target_tile_bytes=8 * 1024 * 1024,
                       min_tile_bytes=1 * 1024 * 1024,
                       target_steps=8):
    """Batch rows per grid step.

    ~8 MiB tiles (double-buffered ~16 MiB: fits v5e/v6e and v7x's 64 MiB/TC
    under the 32 MiB scoped-VMEM limit below), rounded down to a multiple of 8
    (sublane aligned, unmasked loads), and capped so large batches get at
    least `target_steps` grid steps (>= ~4 per TensorCore on v7x megacore)
    while tiles stay >= ~1 MiB so per-step overhead (~0.35 us) is <5%.
    """
    cap = max(1, target_tile_bytes // row_bytes)
    floor = max(1, min_tile_bytes // row_bytes)
    per_step = -(-B // target_steps)
    bt = min(cap, max(floor, per_step))
    if bt >= B:
        return int(B)                        # whole batch in one grid step
    bt = max(8, (bt // 8) * 8)               # sublane-aligned blocks
    return int(min(bt, B))


def exp_net_forward(x, w1, b1, w2, b2):
    """x: (B, T, D); w1: (1, D); b1: (1,); w2: (1, T); b2: (1,) -> (B, 1, 1)."""
    B, T, D = x.shape
    TD = T * D

    # Flatten features (free reshape: contiguous) and fuse fc1/fc2 weights.
    x2 = x.astype(jnp.float32).reshape(B, TD)
    w_eff = (w2.reshape(T, 1) * w1.reshape(1, D)).astype(jnp.float32).reshape(1, TD)
    c = (b1.reshape(()) * jnp.sum(w2) + b2.reshape(())).astype(jnp.float32).reshape(1, 1)

    bt = _choose_batch_tile(B, TD * 4)
    grid = -(-B // bt)
    ragged = (B % bt) != 0

    out2d = pl.pallas_call(
        _build_kernel(B, bt, ragged),
        out_shape=jax.ShapeDtypeStruct((grid, bt), jnp.float32),
        grid=(grid,),
        in_specs=[
            pl.BlockSpec(memory_space=pltpu.MemorySpace.SMEM),   # c (scalar)
            pl.BlockSpec((bt, TD), lambda g: (g, 0)),            # x batch tile
            pl.BlockSpec((1, TD), lambda g: (0, 0)),             # fused weight
        ],
        out_specs=pl.BlockSpec((1, bt), lambda g: (g, 0)),       # lane-dense row
        compiler_params=pltpu.CompilerParams(
            dimension_semantics=("parallel",),
            vmem_limit_bytes=32 * 1024 * 1024,
        ),
        cost_estimate=pl.CostEstimate(
            flops=2 * B * TD,
            transcendentals=0,
            bytes_accessed=B * TD * 4 + TD * 4 + B * 4,
        ),
    )(c, x2, w_eff)

    return out2d.reshape(-1)[:B].reshape(B, 1, 1)


def exp_net_reference(x, w1, b1, w2, b2):
    h = jnp.einsum("btd,od->bto", x, w1) + b1          # (B, T, 1)
    h = jnp.transpose(h, (0, 2, 1))                    # (B, 1, T)
    y = jnp.einsum("bot,pt->bop", h, w2) + b2          # (B, 1, 1)
    return y


if __name__ == "__main__":
    # Small shapes consistent with the module: batch=2, feature_len=8, feature_dim=32.
    B, T, D = 2, 8, 32
    key = jax.random.PRNGKey(0)
    kx, kw1, kb1, kw2, kb2 = jax.random.split(key, 5)

    x = jax.random.normal(kx, (B, T, D), dtype=jnp.float32)
    # Parameter shapes match torch.nn.Linear(feature_dim, 1) / Linear(feature_len, 1).
    w1 = jax.random.uniform(kw1, (1, D), jnp.float32, -1.0 / D ** 0.5, 1.0 / D ** 0.5)
    b1 = jax.random.uniform(kb1, (1,), jnp.float32, -1.0 / D ** 0.5, 1.0 / D ** 0.5)
    w2 = jax.random.uniform(kw2, (1, T), jnp.float32, -1.0 / T ** 0.5, 1.0 / T ** 0.5)
    b2 = jax.random.uniform(kb2, (1,), jnp.float32, -1.0 / T ** 0.5, 1.0 / T ** 0.5)

    out = exp_net_forward(x, w1, b1, w2, b2)
    out = jax.block_until_ready(out)

    ref = exp_net_reference(x, w1, b1, w2, b2)
    assert out.shape == (B, 1, 1), out.shape
    # Fused single-pass f32 summation order differs slightly from the two-stage reference.
    assert jnp.allclose(out, ref, atol=1e-4, rtol=1e-4), (out, ref)

    print("KERNEL_OK")
</pallas_src>

<mosaic_0001>
module attributes {stable_mosaic.version = 11 : i64} {
  func.func @kernel(%arg0: i32, %arg1: memref<1x1xf32, #tpu.memory_space<smem>>, %arg2: memref<2x256xf32, #tpu.memory_space<vmem>>, %arg3: memref<1x256xf32, #tpu.memory_space<vmem>>, %arg4: memref<1x2xf32, #tpu.memory_space<vmem>>) attributes {dimension_semantics = [#tpu.dimension_semantics<parallel>], iteration_bounds = array<i64: 1>, scalar_prefetch = 0 : i64, scratch_operands = 0 : i64, tpu.core_type = #tpu.core_type<tc>, window_params = [{transform_indices = @transform_0, window_bounds = array<i64: 1, 1>}, {transform_indices = @transform_1, window_bounds = array<i64: 2, 256>}, {pipeline_mode = #tpu.pipeline_mode<synchronous>, transform_indices = @transform_2, window_bounds = array<i64: 1, 256>}, {transform_indices = @transform_3, window_bounds = array<i64: 1, 2>}]} {
    %c0 = arith.constant 0 : index
    %c0_0 = arith.constant 0 : index
    %0 = vector.load %arg2[%c0, %c0_0] : memref<2x256xf32, #tpu.memory_space<vmem>>, vector<2x256xf32>
    %c0_1 = arith.constant 0 : index
    %c0_2 = arith.constant 0 : index
    %1 = vector.load %arg3[%c0_1, %c0_2] : memref<1x256xf32, #tpu.memory_space<vmem>>, vector<1x256xf32>
    %2 = vector.broadcast %1 : vector<1x256xf32> to vector<2x256xf32>
    %3 = arith.mulf %0, %2 : vector<2x256xf32>
    %cst = arith.constant dense<0.000000e+00> : vector<2xf32>
    %4 = vector.multi_reduction <add>, %3, %cst [1] : vector<2x256xf32> to vector<2xf32>
    %c0_3 = arith.constant 0 : index
    %c0_4 = arith.constant 0 : index
    %5 = memref.load %arg1[%c0_3, %c0_4] : memref<1x1xf32, #tpu.memory_space<smem>>
    %6 = vector.broadcast %5 : f32 to vector<2xf32>
    %7 = arith.addf %4, %6 : vector<2xf32>
    %c0_5 = arith.constant 0 : index
    %c0_6 = arith.constant 0 : index
    %8 = vector.load %arg4[%c0_5, %c0_6] : memref<1x2xf32, #tpu.memory_space<vmem>>, vector<1x2xf32>
    %9 = vector.shape_cast %8 : vector<1x2xf32> to vector<2xf32>
    %10 = vector.shape_cast %7 : vector<2xf32> to vector<1x2xf32>
    tpu.vector_store %arg4[%c0_5, %c0_6], %10 {strides = array<i32>} : memref<1x2xf32, #tpu.memory_space<vmem>>, vector<1x2xf32>,
    return
  }
  func.func @transform_0(%arg0: i32) -> (i32, i32) {
    %c0_i32 = arith.constant 0 : i32
    %c0_i32_0 = arith.constant 0 : i32
    %c0_i32_1 = arith.constant 0 : i32
    return %c0_i32, %c0_i32_0 : i32, i32
  }
  func.func @transform_1(%arg0: i32) -> (i32, i32) {
    %c0_i32 = arith.constant 0 : i32
    %c0_i32_0 = arith.constant 0 : i32
    return %arg0, %c0_i32 : i32, i32
  }
  func.func @transform_2(%arg0: i32) -> (i32, i32) {
    %c0_i32 = arith.constant 0 : i32
    %c0_i32_0 = arith.constant 0 : i32
    %c0_i32_1 = arith.constant 0 : i32
    return %c0_i32, %c0_i32_0 : i32, i32
  }
  func.func @transform_3(%arg0: i32) -> (i32, i32) {
    %c0_i32 = arith.constant 0 : i32
    %c0_i32_0 = arith.constant 0 : i32
    return %arg0, %c0_i32 : i32, i32
  }
}

</mosaic_0001>

<llo_original>
// kernel: tpu_custom_call.1
$region0: #{tpu_custom_call.1}
  #allocation0 [shape = 'u32[]', space=smem, size = 0x4, offset = 0x4, fixed_abs, tag = 'smem constant byte address 0x4 - core index']
  #allocation1 [shape = 'u32[72,128]{1,0:T(1,128)}', space=vmem, size = 0x9000, scoped, tag = 'internal scratch']
  #allocation2 [shape = 'f32[1,1]{1,0:T(1,128)S(6)}', space=smem, size = 0x200, scoped, tag = 'scoped memory for tpu_custom_call.1']
  %s0 = inlined_call_operand.<no memory space> [shape: f32[1,1], index: 0, kind: input, shape index: {}]
  %s1 = inlined_call_operand.hbm [shape: f32[2,256], index: 1, kind: input, shape index: {}]
  %s2 = inlined_call_operand.vmem [shape: f32[1,256], index: 2, kind: input, shape index: {}]
  %s3 = inlined_call_operand.hbm [shape: f32[1,2], index: 3, kind: output, shape index: {}]
  %s4 = sld [smem:[#allocation0]]
  $region26: #{tpu_custom_call.1} parent=0
    _
  %s6 = ssub.s32 1, %s4
  %s7 = scalar_select 0, %s6, %s4
  %8 = sst [smem:[#allocation2]] %s0
  $region1: #{tpu_custom_call.1} parent=0
    #allocation3 [shape = 'u8[2048]{0}', space=vmem, size = 0x800, scoped, tag = 'input window, operand 1, single buffered']
    #allocation4 [shape = 's32[1]{0}', space=sflag, size = 0x4, scoped, tag = 'scoped memory for tpu_custom_call.1']
    #allocation5 [shape = 's32[1]{0}', space=sflag, size = 0x4, scoped, tag = 'scoped memory for tpu_custom_call.1']
    #allocation6 [shape = 'u8[512]{0}', space=vmem, size = 0x400, scoped, tag = 'output window, operand 0, single buffered']
    %9 = vsyncpa [#allocation4], 0
    %10 = vsyncpa [#allocation5], 0
    // Predicated region
    $region2: #{tpu_custom_call.1} parent=1 // pred_check
      _
    $region3: #{tpu_custom_call.1} parent=1 // pred_check_branch
      %12 = sbr.rel (0) target = $region5
    $region4: #{tpu_custom_call.1} parent=1 // pred_region
      _
    $region5: #{tpu_custom_call.1} parent=1 // pred_fallthru
      _
    // Predicated region
    $region6: #{tpu_custom_call.1} parent=1 // pred_check
      _
    $region7: #{tpu_custom_call.1} parent=1 // pred_check_branch
      %14 = sbr.rel (0) target = $region9
    $region8: #{tpu_custom_call.1} parent=1 // pred_region
      %16 = vsyncadd [#allocation4], 0
      %s18 = sshll.u32 %s1, 4
      %s19 = int_to_ptr.hbm [resolvable:$true] %s18
      %s20 = sshll.u32 [#allocation3], 4
      %s21 = int_to_ptr.vmem [resolvable:$true] %s20
      %23 = dma.hbm_to_vmem [thread:$0]  %s19, 64, %s21, [#allocation4]
    $region9: #{tpu_custom_call.1} parent=1 // pred_fallthru
      _
    // Predicated region
    $region10: #{tpu_custom_call.1} parent=1 // pred_check
      _
    $region11: #{tpu_custom_call.1} parent=1 // pred_check_branch
      %25 = sbr.rel (0) target = $region13
    $region12: #{tpu_custom_call.1} parent=1 // pred_region
      _
    $region13: #{tpu_custom_call.1} parent=1 // pred_fallthru
      _
    // Predicated region
    $region14: #{tpu_custom_call.1} parent=1 // pred_check
      _
    $region15: #{tpu_custom_call.1} parent=1 // pred_check_branch
      %27 = sbr.rel (0) target = $region17
    $region16: #{tpu_custom_call.1} parent=1 // pred_region
      %29 = dma.done [#allocation4], 64
    $region17: #{tpu_custom_call.1} parent=1 // pred_fallthru
      _
    %v30 = vld [vmem:[#allocation3] sm:$0xf]
    %v31 = vld [vmem:[%s2] sm:$0x3]
    %v33 = vperm.slane %v31, 0
    %v34 = vperm.slane %v31, 1
    %v35 = vrot.slane %v34, 6
    %vm36 = vcmask 1041408
    %v37 = vsel %vm36, %v33, %v35
    %v39 = vmul.f32 %v30, %v37
    %41 = vst [vmem:[#allocation1] ss:$4 sm:$0xff] %v39
    %v42 = vld.sshfl [vmem:[#allocation1] sm:$0xff pattern:$0x73625140]
    %v43 = vld.sshfl [vmem:[#allocation1 + $0x8] sm:$0xff pattern:$0x73625140]
    %v46 = vsel %vm36, %v42, 0.0
    %v47 = vsel %vm36, %v43, 0.0
    %v48 = vadd.f32 %v46, %v47
    %49 = vadd.xlane.f32.xlu0 %v48
    %v50 = vpop.xlane.xlu0 %49
    %s51 = sld [smem:[#allocation2]]
    %v52 = vstv %s51
    %v53 = vadd.f32 %v50, %v52
    %v55 = vlaneseq
    %v56 = vand.u32 %v55, 127
    %v57 = vperm.slane %v53, %v56
    %vm59 = vcmask 8192
    %60 = vst.msk [vmem:[#allocation6] sm:$0x1] %vm59, %v57
    // Predicated region
    $region18: #{tpu_custom_call.1} parent=1 // pred_check
      _
    $region19: #{tpu_custom_call.1} parent=1 // pred_check_branch
      %62 = sbr.rel (0) target = $region21
    $region20: #{tpu_custom_call.1} parent=1 // pred_region
      %64 = vsyncadd [#allocation5], 0
      %s66 = sshll.u32 [#allocation6], 4
      %s67 = int_to_ptr.vmem [resolvable:$true] %s66
      %s68 = sshll.u32 %s3, 4
      %s69 = int_to_ptr.hbm [resolvable:$true] %s68
      %71 = dma.vmem_to_hbm [thread:$0]  %s67, 16, %s69, [#allocation5]
    $region21: #{tpu_custom_call.1} parent=1 // pred_fallthru
      _
    // Predicated region
    $region22: #{tpu_custom_call.1} parent=1 // pred_check
      _
    $region23: #{tpu_custom_call.1} parent=1 // pred_check_branch
      %73 = sbr.rel (0) target = $region25
    $region24: #{tpu_custom_call.1} parent=1 // pred_region
      %75 = dma.done [#allocation5], 16
    $region25: #{tpu_custom_call.1} parent=1 // pred_fallthru
      _
    %76 = vsyncpa [#allocation4], 1
    %77 = vsyncpa [#allocation5], 1

</llo_original>
